<compile_context>
chip_gen: v7x
topology: tpu7x:2x2x1
jax: 0.10.0
libtpu: 0.0.40
codegen_flags: <defaults>
</compile_context>

<pallas_src>
import functools
import math

import jax
import jax.numpy as jnp
from jax.experimental import pallas as pl
from jax.experimental.pallas import tpu as pltpu


def _round_up(x: int, m: int) -> int:
    return (x + m - 1) // m * m


def _cdiv(a: int, b: int) -> int:
    return (a + b - 1) // b


def _bsq_kernel(x_ref, we_ref, be_ref, wd_ref, bd_ref, o_ref):
    # x_ref  : (TM, PD)  row tile of lane-packed input
    # we_ref : (PD, PC)  block-diagonal encoder weight (pre-transposed)
    # be_ref : (1,  PC)  tiled encoder bias
    # wd_ref : (PC, PD)  block-diagonal decoder weight (pre-transposed)
    # bd_ref : (1,  PD)  tiled decoder bias
    # o_ref  : (TM, PD)  output tile
    proj = jnp.dot(x_ref[...], we_ref[...],
                   preferred_element_type=jnp.float32) + be_ref[...]
    # diff_sign forward value (+-1, with 0 -> +1). The L2 normalization of the
    # reference is sign-invariant, so it is omitted here (value-identical).
    code = jnp.where(proj >= 0, 1.0, -1.0).astype(wd_ref.dtype)
    out = jnp.dot(code, wd_ref[...],
                  preferred_element_type=jnp.float32) + bd_ref[...]
    o_ref[...] = out.astype(o_ref.dtype)


def pack_bsq_params(w_enc, b_enc, w_dec, b_dec):
    """One-time weight preparation, hoisted out of the per-call jitted path.

    Returns ((we_p, be_p, wd_p, bd_p), pack) where `pack` is the number of
    logical rows folded into one 128-lane-aligned physical row.
    """
    C, D = w_enc.shape
    if D < 128:
        P = 128 // math.gcd(D, 128)          # PD = lcm(D, 128), multiple of 128
        # Guard against pathological D blowing up the block-diagonal weights.
        if (P * D) * (P * C) * jnp.dtype(w_enc.dtype).itemsize > (4 << 20):
            P = 1
    else:
        P = 1
    PD, PC = P * D, P * C

    we_t = w_enc.T                           # (D, C)
    wd_t = w_dec.T                           # (C, D)
    if P > 1:
        eye = jnp.eye(P, dtype=we_t.dtype)
        we_p = jnp.einsum("pq,dc->pdqc", eye, we_t).reshape(PD, PC)
        wd_p = jnp.einsum("pq,cd->pcqd", eye.astype(wd_t.dtype), wd_t).reshape(PC, PD)
        be_p = jnp.tile(b_enc.reshape(1, C), (1, P))   # (1, PC)
        bd_p = jnp.tile(b_dec.reshape(1, D), (1, P))   # (1, PD)
    else:
        we_p, wd_p = we_t, wd_t
        be_p = b_enc.reshape(1, C)
        bd_p = b_dec.reshape(1, D)
    return (we_p, be_p, wd_p, bd_p), P


@functools.partial(jax.jit, static_argnames=("embedding_dim", "pack", "tile_m"))
def bsq_forward_packed(x, we_p, be_p, wd_p, bd_p, *,
                       embedding_dim, pack, tile_m=2048):
    """x: (..., embedding_dim). Returns same shape/dtype as x."""
    D, P = embedding_dim, pack
    PD, PC = we_p.shape
    orig_shape = x.shape
    x2 = x.reshape(-1, D)
    N = x2.shape[0]

    itemsize = jnp.dtype(x.dtype).itemsize
    sub = {4: 8, 2: 16, 1: 32}.get(itemsize, 8)       # dtype-aware sublane multiple

    # Pack P logical rows per physical row. Pad only to the pack multiple (<= P-1
    # rows) plus, for tiny inputs, up to the sublane multiple. The common aligned
    # case is completely copy-free on both input and output.
    rows = _cdiv(max(N, 1), P)
    if rows < sub:
        rows = sub
    n_need = rows * P
    if n_need > N:
        x2 = jnp.pad(x2, ((0, n_need - N), (0, 0)))
    x_packed = x2.reshape(rows, PD)

    # VMEM budget: double-buffered x/out tiles + lane-padded f32 proj/code
    # intermediates + f32 decode result, plus the (double-buffered) weights.
    # 12 MiB stays under v5e's 16 MiB default scoped VMEM (32 MiB on v6e/v7x).
    lane = 128
    pc_pad = _round_up(PC, lane)
    pd_pad = _round_up(PD, lane)
    per_row = (4 * PD * itemsize           # x + out tiles, double-buffered
               + 2 * pc_pad * 4            # proj (f32) + code
               + pd_pad * 4)               # f32 decode result before the cast
    w_itemsize = jnp.dtype(we_p.dtype).itemsize
    weight_bytes = 2 * (2 * PD * PC + PC + PD) * w_itemsize
    vmem_budget = 12 * 1024 * 1024
    avail = max(vmem_budget - weight_bytes, per_row * sub)
    max_rows = max(sub, (avail // per_row) // sub * sub)

    tile = min(tile_m, max_rows, _round_up(rows, sub))
    tile = max(sub, tile // sub * sub)
    # Keep >= 2 grid steps for medium/large inputs so the "parallel" grid axis
    # can shard across v7x's two TensorCores.
    if rows > 2 * sub:
        tile = min(tile, max(sub, _round_up(_cdiv(rows, 2), sub)))

    grid = (_cdiv(rows, tile),)            # boundary block masked by Pallas

    out_packed = pl.pallas_call(
        _bsq_kernel,
        out_shape=jax.ShapeDtypeStruct((rows, PD), x.dtype),
        grid_spec=pltpu.PrefetchScalarGridSpec(
            num_scalar_prefetch=0,
            grid=grid,
            in_specs=[
                pl.BlockSpec((tile, PD), lambda i: (i, 0)),   # x row tile
                pl.BlockSpec((PD, PC), lambda i: (0, 0)),     # encoder weight
                pl.BlockSpec((1, PC), lambda i: (0, 0)),      # encoder bias
                pl.BlockSpec((PC, PD), lambda i: (0, 0)),     # decoder weight
                pl.BlockSpec((1, PD), lambda i: (0, 0)),      # decoder bias
            ],
            out_specs=pl.BlockSpec((tile, PD), lambda i: (i, 0)),
        ),
        compiler_params=pltpu.CompilerParams(
            dimension_semantics=("parallel",)),
    )(x_packed, we_p, be_p, wd_p, bd_p)

    out = out_packed.reshape(n_need, D)
    if n_need > N:
        out = out[:N]
    return out.reshape(orig_shape)


def bsq_forward(x, w_enc, b_enc, w_dec, b_dec, *, tile_m=2048):
    """Convenience wrapper: packs weights then runs the fused kernel."""
    packed, pack = pack_bsq_params(w_enc, b_enc, w_dec, b_dec)
    return bsq_forward_packed(x, *packed,
                              embedding_dim=w_enc.shape[1], pack=pack,
                              tile_m=tile_m)


def _torch_linear_init(key, out_features, in_features):
    """Deterministic init matching torch.nn.Linear defaults:
    U(-1/sqrt(fan_in), 1/sqrt(fan_in)) for both weight and bias."""
    kw, kb = jax.random.split(key)
    bound = 1.0 / jnp.sqrt(jnp.float32(in_features))
    w = jax.random.uniform(kw, (out_features, in_features), jnp.float32,
                           minval=-bound, maxval=bound)
    b = jax.random.uniform(kb, (out_features,), jnp.float32,
                           minval=-bound, maxval=bound)
    return w, b


def _reference_forward(x, w_enc, b_enc, w_dec, b_dec):
    # Full reference including the (sign-invariant) normalization.
    proj = x @ w_enc.T + b_enc
    norm = jnp.linalg.norm(proj, axis=-1, keepdims=True)
    proj_n = proj / jnp.maximum(norm, 1e-12)
    code = jnp.where(proj_n >= 0, 1.0, -1.0)
    return code @ w_dec.T + b_dec


if __name__ == "__main__":
    codebook_bits = 8
    embedding_dim = 32
    batch, seq = 2, 8                    # flattened rows N = 16

    key = jax.random.PRNGKey(0)
    k_x, k_enc, k_dec = jax.random.split(key, 3)

    x = jax.random.normal(k_x, (batch, seq, embedding_dim), jnp.float32)
    w_enc, b_enc = _torch_linear_init(k_enc, codebook_bits, embedding_dim)
    w_dec, b_dec = _torch_linear_init(k_dec, embedding_dim, codebook_bits)

    # Pack weights once (hoisted out of the per-call path), then run the kernel.
    packed, pack = pack_bsq_params(w_enc, b_enc, w_dec, b_dec)
    out = bsq_forward_packed(x, *packed, embedding_dim=embedding_dim, pack=pack)
    out = jax.block_until_ready(out)

    ref = _reference_forward(x, w_enc, b_enc, w_dec, b_dec)
    assert out.shape == x.shape
    assert jnp.allclose(out, ref, atol=1e-5, rtol=1e-5), "mismatch vs reference"

    print("KERNEL_OK")
</pallas_src>

<mosaic_0001>
module attributes {stable_mosaic.version = 11 : i64} {
  func.func @_bsq_kernel(%arg0: i32, %arg1: memref<8x128xf32, #tpu.memory_space<vmem>>, %arg2: memref<128x32xf32, #tpu.memory_space<vmem>>, %arg3: memref<1x32xf32, #tpu.memory_space<vmem>>, %arg4: memref<32x128xf32, #tpu.memory_space<vmem>>, %arg5: memref<1x128xf32, #tpu.memory_space<vmem>>, %arg6: memref<8x128xf32, #tpu.memory_space<vmem>>) attributes {dimension_semantics = [#tpu.dimension_semantics<parallel>], iteration_bounds = array<i64: 1>, scalar_prefetch = 0 : i64, scratch_operands = 0 : i64, tpu.core_type = #tpu.core_type<tc>, window_params = [{transform_indices = @transform_0, window_bounds = array<i64: 8, 128>}, {pipeline_mode = #tpu.pipeline_mode<synchronous>, transform_indices = @transform_1, window_bounds = array<i64: 128, 32>}, {pipeline_mode = #tpu.pipeline_mode<synchronous>, transform_indices = @transform_2, window_bounds = array<i64: 1, 32>}, {pipeline_mode = #tpu.pipeline_mode<synchronous>, transform_indices = @transform_3, window_bounds = array<i64: 32, 128>}, {pipeline_mode = #tpu.pipeline_mode<synchronous>, transform_indices = @transform_4, window_bounds = array<i64: 1, 128>}, {transform_indices = @transform_5, window_bounds = array<i64: 8, 128>}]} {
    %c0 = arith.constant 0 : index
    %c0_0 = arith.constant 0 : index
    %0 = vector.load %arg1[%c0, %c0_0] : memref<8x128xf32, #tpu.memory_space<vmem>>, vector<8x128xf32>
    %c0_1 = arith.constant 0 : index
    %c0_2 = arith.constant 0 : index
    %1 = vector.load %arg2[%c0_1, %c0_2] : memref<128x32xf32, #tpu.memory_space<vmem>>, vector<128x32xf32>
    %cst = arith.constant dense<0.000000e+00> : vector<8x32xf32>
    %2 = tpu.matmul %0, %1, %cst {dimension_numbers = #tpu.dot_dimension_numbers<[1], [0], [0], [1], [0, 0, 1, 1], [], []>} : vector<8x128xf32>, vector<128x32xf32>, vector<8x32xf32> -> vector<8x32xf32>
    %c0_3 = arith.constant 0 : index
    %c0_4 = arith.constant 0 : index
    %3 = vector.load %arg3[%c0_3, %c0_4] : memref<1x32xf32, #tpu.memory_space<vmem>>, vector<1x32xf32>
    %4 = vector.broadcast %3 : vector<1x32xf32> to vector<8x32xf32>
    %5 = arith.addf %2, %4 : vector<8x32xf32>
    %cst_5 = arith.constant 0.000000e+00 : f32
    %6 = vector.broadcast %cst_5 : f32 to vector<8x32xf32>
    %7 = arith.cmpf oge, %5, %6 : vector<8x32xf32>
    %cst_6 = arith.constant 1.000000e+00 : f32
    %cst_7 = arith.constant -1.000000e+00 : f32
    %8 = vector.broadcast %cst_6 : f32 to vector<8x32xf32>
    %9 = vector.broadcast %cst_7 : f32 to vector<8x32xf32>
    %10 = arith.select %7, %8, %9 : vector<8x32xi1>, vector<8x32xf32>
    %c0_8 = arith.constant 0 : index
    %c0_9 = arith.constant 0 : index
    %11 = vector.load %arg4[%c0_8, %c0_9] : memref<32x128xf32, #tpu.memory_space<vmem>>, vector<32x128xf32>
    %cst_10 = arith.constant dense<0.000000e+00> : vector<8x128xf32>
    %12 = tpu.matmul %10, %11, %cst_10 {dimension_numbers = #tpu.dot_dimension_numbers<[1], [0], [0], [1], [0, 0, 1, 1], [], []>} : vector<8x32xf32>, vector<32x128xf32>, vector<8x128xf32> -> vector<8x128xf32>
    %c0_11 = arith.constant 0 : index
    %c0_12 = arith.constant 0 : index
    %13 = vector.load %arg5[%c0_11, %c0_12] : memref<1x128xf32, #tpu.memory_space<vmem>>, vector<1x128xf32>
    %14 = vector.broadcast %13 : vector<1x128xf32> to vector<8x128xf32>
    %15 = arith.addf %12, %14 : vector<8x128xf32>
    %c0_13 = arith.constant 0 : index
    %c0_14 = arith.constant 0 : index
    %16 = vector.load %arg6[%c0_13, %c0_14] : memref<8x128xf32, #tpu.memory_space<vmem>>, vector<8x128xf32>
    tpu.vector_store %arg6[%c0_13, %c0_14], %15 {strides = array<i32>} : memref<8x128xf32, #tpu.memory_space<vmem>>, vector<8x128xf32>,
    return
  }
  func.func @transform_0(%arg0: i32) -> (i32, i32) {
    %c0_i32 = arith.constant 0 : i32
    %c0_i32_0 = arith.constant 0 : i32
    return %arg0, %c0_i32 : i32, i32
  }
  func.func @transform_1(%arg0: i32) -> (i32, i32) {
    %c0_i32 = arith.constant 0 : i32
    %c0_i32_0 = arith.constant 0 : i32
    %c0_i32_1 = arith.constant 0 : i32
    return %c0_i32, %c0_i32_0 : i32, i32
  }
  func.func @transform_2(%arg0: i32) -> (i32, i32) {
    %c0_i32 = arith.constant 0 : i32
    %c0_i32_0 = arith.constant 0 : i32
    %c0_i32_1 = arith.constant 0 : i32
    return %c0_i32, %c0_i32_0 : i32, i32
  }
  func.func @transform_3(%arg0: i32) -> (i32, i32) {
    %c0_i32 = arith.constant 0 : i32
    %c0_i32_0 = arith.constant 0 : i32
    %c0_i32_1 = arith.constant 0 : i32
    return %c0_i32, %c0_i32_0 : i32, i32
  }
  func.func @transform_4(%arg0: i32) -> (i32, i32) {
    %c0_i32 = arith.constant 0 : i32
    %c0_i32_0 = arith.constant 0 : i32
    %c0_i32_1 = arith.constant 0 : i32
    return %c0_i32, %c0_i32_0 : i32, i32
  }
  func.func @transform_5(%arg0: i32) -> (i32, i32) {
    %c0_i32 = arith.constant 0 : i32
    %c0_i32_0 = arith.constant 0 : i32
    return %arg0, %c0_i32 : i32, i32
  }
}

</mosaic_0001>

<llo_original>
// kernel: bsq_forward_packed.1
$region0: #{bsq_forward_packed.1}
  #allocation0 [shape = 'u32[]', space=smem, size = 0x4, offset = 0x4, fixed_abs, tag = 'smem constant byte address 0x4 - core index']
  #allocation1 [shape = 'u32[144,128]{1,0:T(1,128)}', space=vmem, size = 0x12000, scoped, tag = 'internal scratch']
  %s0 = inlined_call_operand.vmem [shape: f32[8,128], index: 0, kind: input, shape index: {}]
  %s1 = inlined_call_operand.vmem [shape: f32[128,32], index: 1, kind: input, shape index: {}]
  %s2 = inlined_call_operand.vmem [shape: f32[1,32], index: 2, kind: input, shape index: {}]
  %s3 = inlined_call_operand.vmem [shape: f32[32,128], index: 3, kind: input, shape index: {}]
  %s4 = inlined_call_operand.vmem [shape: f32[1,128], index: 4, kind: input, shape index: {}]
  %s5 = inlined_call_operand.vmem [shape: f32[8,128], index: 5, kind: output, shape index: {}]
  %s6 = sld [smem:[#allocation0]]
  $region30: #{bsq_forward_packed.1} parent=0
    _
  %s8 = ssub.s32 1, %s6
  %s9 = scalar_select 0, %s8, %s6
  // Predicated region
  $region2: #{bsq_forward_packed.1} parent=0 // pred_check
    _
  $region3: #{bsq_forward_packed.1} parent=0 // pred_check_branch
    %11 = sbr.rel (0) target = $region5
  $region4: #{bsq_forward_packed.1} parent=0 // pred_region
    _
  $region5: #{bsq_forward_packed.1} parent=0 // pred_fallthru
    _
  // Predicated region
  $region6: #{bsq_forward_packed.1} parent=0 // pred_check
    _
  $region7: #{bsq_forward_packed.1} parent=0 // pred_check_branch
    %13 = sbr.rel (0) target = $region9
  $region8: #{bsq_forward_packed.1} parent=0 // pred_region
    _
  $region9: #{bsq_forward_packed.1} parent=0 // pred_fallthru
    _
  // Predicated region
  $region10: #{bsq_forward_packed.1} parent=0 // pred_check
    _
  $region11: #{bsq_forward_packed.1} parent=0 // pred_check_branch
    %15 = sbr.rel (0) target = $region13
  $region12: #{bsq_forward_packed.1} parent=0 // pred_region
    _
  $region13: #{bsq_forward_packed.1} parent=0 // pred_fallthru
    _
  // Predicated region
  $region14: #{bsq_forward_packed.1} parent=0 // pred_check
    _
  $region15: #{bsq_forward_packed.1} parent=0 // pred_check_branch
    %17 = sbr.rel (0) target = $region17
  $region16: #{bsq_forward_packed.1} parent=0 // pred_region
    _
  $region17: #{bsq_forward_packed.1} parent=0 // pred_fallthru
    _
  // Predicated region
  $region18: #{bsq_forward_packed.1} parent=0 // pred_check
    _
  $region19: #{bsq_forward_packed.1} parent=0 // pred_check_branch
    %19 = sbr.rel (0) target = $region21
  $region20: #{bsq_forward_packed.1} parent=0 // pred_region
    _
  $region21: #{bsq_forward_packed.1} parent=0 // pred_fallthru
    _
  %v20 = vld [vmem:[%s0] sm:$0xff]
  %v21 = vld [vmem:[%s1] sm:$0xff]
  %v22 = vld [vmem:[%s1 + $0x8] sm:$0xff]
  %v23 = vld [vmem:[%s1 + $0x10] sm:$0xff]
  %v24 = vld [vmem:[%s1 + $0x18] sm:$0xff]
  %v25 = vld [vmem:[%s1 + $0x20] sm:$0xff]
  %v26 = vld [vmem:[%s1 + $0x28] sm:$0xff]
  %v27 = vld [vmem:[%s1 + $0x30] sm:$0xff]
  %v28 = vld [vmem:[%s1 + $0x38] sm:$0xff]
  %v29 = vld [vmem:[%s1 + $0x40] sm:$0xff]
  %v30 = vld [vmem:[%s1 + $0x48] sm:$0xff]
  %v31 = vld [vmem:[%s1 + $0x50] sm:$0xff]
  %v32 = vld [vmem:[%s1 + $0x58] sm:$0xff]
  %v33 = vld [vmem:[%s1 + $0x60] sm:$0xff]
  %v34 = vld [vmem:[%s1 + $0x68] sm:$0xff]
  %v35 = vld [vmem:[%s1 + $0x70] sm:$0xff]
  %v36 = vld [vmem:[%s1 + $0x78] sm:$0xff]
  %v37 = vld [vmem:[%s2] sm:$0x1]
  %v39 = vlaneseq
  %v40 = vshrl.u32 %v39, 7
  %v41 = vsub.s32 0, %v40
  %v42 = vrot.slane %v37, %v41
  %44 = vmatprep.subr.mxu0 0.0
  %45 = vmatpush1.msra.mxu0 %v21
  %46 = vmatprep.subr.mxu0 0.0
  %47 = vmatpush1.msra.mxu0 %v22
  %48 = vmatprep.subr.mxu0 0.0
  %49 = vmatpush1.msra.mxu0 %v23
  %50 = vmatprep.subr.mxu0 0.0
  %51 = vmatpush1.msra.mxu0 %v24
  %52 = vmatprep.subr.mxu0 0.0
  %53 = vmatpush1.msra.mxu0 %v25
  %54 = vmatprep.subr.mxu0 0.0
  %55 = vmatpush1.msra.mxu0 %v26
  %56 = vmatprep.subr.mxu0 0.0
  %57 = vmatpush1.msra.mxu0 %v27
  %58 = vmatprep.subr.mxu0 0.0
  %59 = vmatpush1.msra.mxu0 %v28
  %60 = vmatprep.subr.mxu0 0.0
  %61 = vmatpush1.msra.mxu0 %v29
  %62 = vmatprep.subr.mxu0 0.0
  %63 = vmatpush1.msra.mxu0 %v30
  %64 = vmatprep.subr.mxu0 0.0
  %65 = vmatpush1.msra.mxu0 %v31
  %66 = vmatprep.subr.mxu0 0.0
  %67 = vmatpush1.msra.mxu0 %v32
  %68 = vmatprep.subr.mxu0 0.0
  %69 = vmatpush1.msra.mxu0 %v33
  %70 = vmatprep.subr.mxu0 0.0
  %71 = vmatpush1.msra.mxu0 %v34
  %72 = vmatprep.subr.mxu0 0.0
  %73 = vmatpush1.msra.mxu0 %v35
  %74 = vmatprep.subr.mxu0 0.0
  %75 = vmatpush1.msra.mxu0 %v36
  %76 = vmatprep.subr.mxu0 0.0
  %77 = vmatpush1.msra.mxu0 0.0
  %78 = vmatprep.subr.mxu0 0.0
  %79 = vmatpush1.msra.mxu0 0.0
  %80 = vmatprep.subr.mxu0 0.0
  %81 = vmatpush1.msra.mxu0 0.0
  %82 = vmatprep.subr.mxu0 0.0
  %83 = vmatpush1.msra.mxu0 0.0
  %84 = vmatprep.subr.mxu0 0.0
  %85 = vmatpush1.msra.mxu0 0.0
  %86 = vmatprep.subr.mxu0 0.0
  %87 = vmatpush1.msra.mxu0 0.0
  %88 = vmatprep.subr.mxu0 0.0
  %89 = vmatpush1.msra.mxu0 0.0
  %90 = vmatprep.subr.mxu0 0.0
  %91 = vmatpush1.msra.mxu0 0.0
  %92 = vmatprep.subr.mxu0 0.0
  %93 = vmatpush1.msra.mxu0 0.0
  %94 = vmatprep.subr.mxu0 0.0
  %95 = vmatpush1.msra.mxu0 0.0
  %96 = vmatprep.subr.mxu0 0.0
  %97 = vmatpush1.msra.mxu0 0.0
  %98 = vmatprep.subr.mxu0 0.0
  %99 = vmatpush1.msra.mxu0 0.0
  %100 = vmatprep.subr.mxu0 0.0
  %101 = vmatpush1.msra.mxu0 0.0
  %102 = vmatprep.subr.mxu0 0.0
  %103 = vmatpush1.msra.mxu0 0.0
  %104 = vmatprep.subr.mxu0 0.0
  %105 = vmatpush1.msra.mxu0 0.0
  %106 = vmatprep.subr.mxu0 0.0
  %107 = vmatpush1.msra.mxu0 0.0
  %108 = vmatprep.mubr.f32.mxu0 0.0
  %109 = vmatmul.mubr.f32.gmra.mrb[0].mxu0 %v20
  %v110 = vpop.f32.mrb[0].mxu0
  %v111 = vadd.f32 %v42, %v110
  %v112 = vpop.f32.mrb[0].mxu0
  %113 = vdwg.mxu0
  %vm114 = vcmp.ge.f32.partialorder %v111, 0.0
  %v115 = vsel %vm114, 1.0, -1.0
  %v116 = vld [vmem:[%s3] sm:$0xff]
  %v117 = vld [vmem:[%s3 + $0x8] sm:$0xff]
  %v118 = vld [vmem:[%s3 + $0x10] sm:$0xff]
  %v119 = vld [vmem:[%s3 + $0x18] sm:$0xff]
  %v120 = vld [vmem:[%s4] sm:$0x1]
  %v122 = vlaneseq
  %v123 = vshrl.u32 %v122, 7
  %v124 = vsub.s32 0, %v123
  %v125 = vrot.slane %v120, %v124
  %vm127 = vcmask 261120
  %v129 = vsel %vm127, %v115, 0
  %131 = vmatprep.subr.mxu0 0.0
  %132 = vmatpush1.msra.mxu0 %v116
  %133 = vmatprep.subr.mxu0 0.0
  %134 = vmatpush1.msra.mxu0 %v117
  %135 = vmatprep.subr.mxu0 0.0
  %136 = vmatpush1.msra.mxu0 %v118
  %137 = vmatprep.subr.mxu0 0.0
  %138 = vmatpush1.msra.mxu0 %v119
  %139 = vmatprep.subr.mxu0 0.0
  %140 = vmatpush1.msra.mxu0 0.0
  %141 = vmatprep.subr.mxu0 0.0
  %142 = vmatpush1.msra.mxu0 0.0
  %143 = vmatprep.subr.mxu0 0.0
  %144 = vmatpush1.msra.mxu0 0.0
  %145 = vmatprep.subr.mxu0 0.0
  %146 = vmatpush1.msra.mxu0 0.0
  %147 = vmatprep.subr.mxu0 0.0
  %148 = vmatpush1.msra.mxu0 0.0
  %149 = vmatprep.subr.mxu0 0.0
  %150 = vmatpush1.msra.mxu0 0.0
  %151 = vmatprep.subr.mxu0 0.0
  %152 = vmatpush1.msra.mxu0 0.0
  %153 = vmatprep.subr.mxu0 0.0
  %154 = vmatpush1.msra.mxu0 0.0
  %155 = vmatprep.subr.mxu0 0.0
  %156 = vmatpush1.msra.mxu0 0.0
  %157 = vmatprep.subr.mxu0 0.0
  %158 = vmatpush1.msra.mxu0 0.0
  %159 = vmatprep.subr.mxu0 0.0
  %160 = vmatpush1.msra.mxu0 0.0
  %161 = vmatprep.subr.mxu0 0.0
  %162 = vmatpush1.msra.mxu0 0.0
  %163 = vmatprep.subr.mxu0 0.0
  %164 = vmatpush1.msra.mxu0 0.0
  %165 = vmatprep.subr.mxu0 0.0
  %166 = vmatpush1.msra.mxu0 0.0
  %167 = vmatprep.subr.mxu0 0.0
  %168 = vmatpush1.msra.mxu0 0.0
  %169 = vmatprep.subr.mxu0 0.0
  %170 = vmatpush1.msra.mxu0 0.0
  %171 = vmatprep.subr.mxu0 0.0
  %172 = vmatpush1.msra.mxu0 0.0
  %173 = vmatprep.subr.mxu0 0.0
  %174 = vmatpush1.msra.mxu0 0.0
  %175 = vmatprep.subr.mxu0 0.0
  %176 = vmatpush1.msra.mxu0 0.0
  %177 = vmatprep.subr.mxu0 0.0
  %178 = vmatpush1.msra.mxu0 0.0
  %179 = vmatprep.subr.mxu0 0.0
  %180 = vmatpush1.msra.mxu0 0.0
  %181 = vmatprep.subr.mxu0 0.0
  %182 = vmatpush1.msra.mxu0 0.0
  %183 = vmatprep.subr.mxu0 0.0
  %184 = vmatpush1.msra.mxu0 0.0
  %185 = vmatprep.subr.mxu0 0.0
  %186 = vmatpush1.msra.mxu0 0.0
  %187 = vmatprep.subr.mxu0 0.0
  %188 = vmatpush1.msra.mxu0 0.0
  %189 = vmatprep.subr.mxu0 0.0
  %190 = vmatpush1.msra.mxu0 0.0
  %191 = vmatprep.subr.mxu0 0.0
  %192 = vmatpush1.msra.mxu0 0.0
  %193 = vmatprep.subr.mxu0 0.0
  %194 = vmatpush1.msra.mxu0 0.0
  %195 = vmatprep.mubr.f32.mxu0 0.0
  %196 = vmatmul.mubr.f32.gmra.mrb[0].mxu0 %v129
  %v197 = vpop.f32.mrb[0].mxu0
  %v198 = vadd.f32 %v125, %v197
  %v199 = vpop.f32.mrb[0].mxu0
  %200 = vdwg.mxu0
  %201 = vst [vmem:[%s5] sm:$0xff] %v198
  // Predicated region
  $region22: #{bsq_forward_packed.1} parent=0 // pred_check
    _
  $region23: #{bsq_forward_packed.1} parent=0 // pred_check_branch
    %203 = sbr.rel (0) target = $region25
  $region24: #{bsq_forward_packed.1} parent=0 // pred_region
    _
  $region25: #{bsq_forward_packed.1} parent=0 // pred_fallthru
    _
  // Predicated region
  $region26: #{bsq_forward_packed.1} parent=0 // pred_check
    _
  $region27: #{bsq_forward_packed.1} parent=0 // pred_check_branch
    %205 = sbr.rel (0) target = $region29
  $region28: #{bsq_forward_packed.1} parent=0 // pred_region
    _
  $region29: #{bsq_forward_packed.1} parent=0 // pred_fallthru
    _

</llo_original>
